<compile_context>
chip_gen: v5e
topology: v5e:2x2
jax: 0.10.0
libtpu: 0.0.40
codegen_flags: <defaults>
</compile_context>

<pallas_src>
import math

import jax
import jax.numpy as jnp
from jax import lax
from jax.experimental import pallas as pl
from jax.experimental.pallas import tpu as pltpu


# ---------------------------------------------------------------------------
# Stage 1: feature-independent GCN chain -> x2_T (H, C_pad).  Cold path.
# ---------------------------------------------------------------------------
def _gcn_precompute_kernel(a_ref, inp_ref, w1_ref, w2_ref, x2t_ref):
    A = a_ref[...]                                       # (Cp, Cp); rows/cols >= C are zero
    rowsum = jnp.sum(A, axis=1, keepdims=True)           # (Cp, 1)
    # clamp: padded rows (and empty co-occurrence rows from a real gen_A) sum to 0
    d = lax.rsqrt(jnp.maximum(rowsum, 1e-12))            # (Cp, 1), single EUP rsqrt

    def adj_mm(s):
        # gen_adj: adj = (A @ D).T @ D = D A^T D.  Compute adj @ s without materializing
        # adj and without transposing A: contract A's axis 0 and fold both diagonal
        # scalings into cheap VPU row-scalings.
        t = d * s                                        # (Cp, H)
        at = lax.dot_general(A, t, (((0,), (0,)), ((), ())),
                             preferred_element_type=jnp.float32)
        return d * at

    s1 = jnp.dot(inp_ref[...], w1_ref[...],
                 preferred_element_type=jnp.float32)     # (Cp, H)  gc1 support
    x1 = adj_mm(s1)                                      # gc1 output
    x1 = jnp.where(x1 >= 0, x1, 0.2 * x1)                # LeakyReLU(0.2)
    s2 = jnp.dot(x1, w2_ref[...],
                 preferred_element_type=jnp.float32)     # (Cp, H)  gc2 support
    x2 = adj_mm(s2)                                      # (Cp, H); padded rows are exactly 0
    # one-time cold-path transpose -> hot kernel gets a canonical lane-dense (H, Cp) RHS
    x2t_ref[...] = jnp.transpose(x2).astype(x2t_ref.dtype)


def precompute_class_embeddings(A, inp, w1, w2, *, out_dtype=jnp.bfloat16):
    """Feature-independent part of Model.forward. Compute once, cache, reuse.

    Returns x2_T of shape (H, C_pad) with the real classes in the first C columns
    (remaining columns are zero).
    """
    C = A.shape[0]
    H = w2.shape[1]
    Cp = ((C + 127) // 128) * 128                        # lane-dense class dim (>= 128)
    if Cp != C:                                          # cold, tiny arrays: pad in wrapper
        A = jnp.pad(A, ((0, Cp - C), (0, Cp - C)))
        inp = jnp.pad(inp, ((0, Cp - C), (0, 0)))
    vmem = pl.BlockSpec(memory_space=pltpu.MemorySpace.VMEM)
    return pl.pallas_call(
        _gcn_precompute_kernel,
        out_shape=jax.ShapeDtypeStruct((H, Cp), out_dtype),
        in_specs=[vmem, vmem, vmem, vmem],               # everything fits in VMEM; no tiling
        out_specs=vmem,
    )(A, inp, w1, w2)


# ---------------------------------------------------------------------------
# Stage 2: hot path  out = sigmoid(feature @ x2_T)
# ---------------------------------------------------------------------------
def _classifier_kernel(x2t_ref, feat_ref, out_ref):
    # cast the streamed feature block in VMEM (no wrapper-side HBM cast pass)
    f = feat_ref[...].astype(x2t_ref.dtype)
    logits = jnp.dot(f, x2t_ref[...],
                     preferred_element_type=jnp.float32)   # (tb, Cp) f32 MXU accumulate
    out_ref[...] = jax.nn.sigmoid(logits)                  # lane-dense unmasked stores


def _choose_batch_tile(B, max_block_b):
    if B <= 128:
        return B                                  # single step: splitting tiny batches is overhead
    # >= 2 grid steps so the "parallel" batch axis shards across v7x's two TensorCores;
    # tile kept <= max_block_b so the double-buffered f32 feature stream stays ~<= 8 MiB
    # (safe under v5e's 16 MiB scoped-VMEM default, and well under v6e/v7x's 32 MiB).
    tb = ((pl.cdiv(B, 2) + 127) // 128) * 128
    return min(max_block_b, tb)


def classify(feature, x2t, *, max_block_b=2048):
    """probs[b, j] = sigmoid(feature[b] . x2t[:, j]).  Columns j >= num_classes are pad (0.5)."""
    B, H = feature.shape
    H2, Cp = x2t.shape
    assert H == H2 and Cp % 128 == 0

    tb = _choose_batch_tile(B, max_block_b)
    grid_b = pl.cdiv(B, tb)                       # ragged last tile handled by edge-block masking

    cost = pl.CostEstimate(
        flops=2 * B * H * Cp,
        transcendentals=B * Cp,
        bytes_accessed=int(B * H * feature.dtype.itemsize
                           + H * Cp * x2t.dtype.itemsize
                           + B * Cp * 4))

    return pl.pallas_call(
        _classifier_kernel,
        out_shape=jax.ShapeDtypeStruct((B, Cp), jnp.float32),
        grid_spec=pltpu.PrefetchScalarGridSpec(
            num_scalar_prefetch=0,
            grid=(grid_b,),
            in_specs=[pl.BlockSpec((H, Cp), lambda i: (0, 0)),    # x2_T: resident, fetched once
                      pl.BlockSpec((tb, H), lambda i: (i, 0))],   # feature: streamed batch tile
            out_specs=pl.BlockSpec((tb, Cp), lambda i: (i, 0))),
        compiler_params=pltpu.CompilerParams(
            dimension_semantics=("parallel",)),    # shards batch across TCs on v7x
        cost_estimate=cost,
    )(x2t, feature)


def mlgcn_forward(feature, A, inp, w1, w2, *, classifier_dtype=jnp.bfloat16):
    """Full Model.forward (minus the external video backbone)."""
    C = A.shape[0]
    x2t = precompute_class_embeddings(A, inp, w1, w2, out_dtype=classifier_dtype)
    probs = classify(feature, x2t)
    return probs[:, :C]          # drop padded class columns (production callers may keep them)


# ---------------------------------------------------------------------------
# Plain-JAX reference mirroring the PyTorch forward
# ---------------------------------------------------------------------------
def reference_forward(feature, A, inp, w1, w2):
    d = lax.rsqrt(jnp.sum(A, axis=1, keepdims=True))   # rowsum ** -0.5 (rowsum > 0 here)
    adj = d * A.T * d.T                                # (A @ D).T @ D = D A^T D
    x = adj @ (inp @ w1)
    x = jnp.where(x >= 0, x, 0.2 * x)                  # LeakyReLU(0.2)
    x = adj @ (x @ w2)
    return jax.nn.sigmoid(feature @ x.T)


if __name__ == "__main__":
    # small, module-consistent shapes
    B = 16    # clips per batch
    C = 8     # num_classes (module default 7, padded to 8; padded class keeps a self-loop)
    E = 32    # word-embedding dim (module default in_channel=300)
    H = 128   # GCN hidden dim (module default 512)

    key = jax.random.PRNGKey(0)
    k_feat, k_A, k_inp, k_w1, k_w2, k_feat2 = jax.random.split(key, 6)

    feature = jax.random.normal(k_feat, (B, H), dtype=jnp.float32)
    # co-occurrence matrix with self-loops (gen_A adds identity) -> row sums strictly > 0
    A = jax.random.uniform(k_A, (C, C), dtype=jnp.float32, minval=0.1, maxval=1.0)
    A = A + jnp.eye(C, dtype=jnp.float32)
    inp = jax.random.normal(k_inp, (C, E), dtype=jnp.float32)

    # GraphConvolution.reset_parameters: uniform(-1/sqrt(out), 1/sqrt(out))
    stdv = 1.0 / math.sqrt(H)
    w1 = jax.random.uniform(k_w1, (E, H), dtype=jnp.float32, minval=-stdv, maxval=stdv)
    w2 = jax.random.uniform(k_w2, (H, H), dtype=jnp.float32, minval=-stdv, maxval=stdv)

    ref = reference_forward(feature, A, inp, w1, w2)

    # Full-precision path: tight check of the two-kernel pipeline against the reference.
    out_f32 = jax.block_until_ready(
        mlgcn_forward(feature, A, inp, w1, w2, classifier_dtype=jnp.float32))
    assert out_f32.shape == (B, C)
    assert jnp.allclose(out_f32, ref, atol=1e-4, rtol=1e-4), "f32 path mismatch vs reference"

    # Production path: x2_T precomputed ONCE (cached) in bf16; hot kernel is just
    # sigmoid(feature @ x2_T) with in-kernel bf16 cast / f32 accumulation.
    x2t = jax.block_until_ready(precompute_class_embeddings(A, inp, w1, w2))  # (H, 128) bf16
    out = jax.block_until_ready(classify(feature, x2t)[:, :C])
    assert out.shape == (B, C)
    assert bool(jnp.all(jnp.isfinite(out)))
    assert jnp.allclose(out, ref, atol=3e-2), "bf16 path mismatch vs reference"

    # Larger, non-divisible batch: exercises >=2 parallel grid steps + edge-block masking,
    # with NO wrapper-side pad/cast of the feature stream.
    B2 = 300
    feature2 = jax.random.normal(k_feat2, (B2, H), dtype=jnp.float32)
    ref2 = reference_forward(feature2, A, inp, w1, w2)
    out2 = jax.block_until_ready(classify(feature2, x2t)[:, :C])
    assert out2.shape == (B2, C)
    assert bool(jnp.all(jnp.isfinite(out2)))
    assert jnp.allclose(out2, ref2, atol=3e-2), "bf16 ragged-batch mismatch vs reference"

    print("KERNEL_OK")
</pallas_src>

<mosaic_0001>
module attributes {stable_mosaic.version = 11 : i64} {
  func.func @_gcn_precompute_kernel(%arg0: memref<128x128xf32, #tpu.memory_space<vmem>>, %arg1: memref<128x32xf32, #tpu.memory_space<vmem>>, %arg2: memref<32x128xf32, #tpu.memory_space<vmem>>, %arg3: memref<128x128xf32, #tpu.memory_space<vmem>>, %arg4: memref<128x128xf32, #tpu.memory_space<vmem>>) attributes {dimension_semantics = [], scalar_prefetch = 0 : i64, scratch_operands = 0 : i64, tpu.core_type = #tpu.core_type<tc>} {
    %c0 = arith.constant 0 : index
    %c0_0 = arith.constant 0 : index
    %0 = vector.load %arg0[%c0, %c0_0] : memref<128x128xf32, #tpu.memory_space<vmem>>, vector<128x128xf32>
    %cst = arith.constant dense<0.000000e+00> : vector<128xf32>
    %1 = vector.multi_reduction <add>, %0, %cst [1] : vector<128x128xf32> to vector<128xf32>
    %2 = vector.shape_cast %1 : vector<128xf32> to vector<128x1xf32>
    %cst_1 = arith.constant 9.99999996E-13 : f32
    %3 = vector.broadcast %cst_1 : f32 to vector<128x1xf32>
    %4 = arith.maximumf %2, %3 : vector<128x1xf32>
    %5 = math.rsqrt %4 : vector<128x1xf32>
    %c0_2 = arith.constant 0 : index
    %c0_3 = arith.constant 0 : index
    %6 = vector.load %arg1[%c0_2, %c0_3] : memref<128x32xf32, #tpu.memory_space<vmem>>, vector<128x32xf32>
    %c0_4 = arith.constant 0 : index
    %c0_5 = arith.constant 0 : index
    %7 = vector.load %arg2[%c0_4, %c0_5] : memref<32x128xf32, #tpu.memory_space<vmem>>, vector<32x128xf32>
    %cst_6 = arith.constant dense<0.000000e+00> : vector<128x128xf32>
    %8 = tpu.matmul %6, %7, %cst_6 {dimension_numbers = #tpu.dot_dimension_numbers<[1], [0], [0], [1], [0, 0, 1, 1], [], []>} : vector<128x32xf32>, vector<32x128xf32>, vector<128x128xf32> -> vector<128x128xf32>
    %9 = vector.broadcast %5 : vector<128x1xf32> to vector<128x128xf32>
    %10 = arith.mulf %9, %8 : vector<128x128xf32>
    %cst_7 = arith.constant dense<0.000000e+00> : vector<128x128xf32>
    %11 = tpu.matmul %0, %10, %cst_7 {dimension_numbers = #tpu.dot_dimension_numbers<[0], [0], [1], [1], [0, 1, 1, 1], [], []>} : vector<128x128xf32>, vector<128x128xf32>, vector<128x128xf32> -> vector<128x128xf32>
    %12 = vector.broadcast %5 : vector<128x1xf32> to vector<128x128xf32>
    %13 = arith.mulf %12, %11 : vector<128x128xf32>
    %cst_8 = arith.constant 0.000000e+00 : f32
    %14 = vector.broadcast %cst_8 : f32 to vector<128x128xf32>
    %15 = arith.cmpf oge, %13, %14 : vector<128x128xf32>
    %cst_9 = arith.constant 2.000000e-01 : f32
    %16 = vector.broadcast %cst_9 : f32 to vector<128x128xf32>
    %17 = arith.mulf %16, %13 : vector<128x128xf32>
    %18 = arith.select %15, %13, %17 : vector<128x128xi1>, vector<128x128xf32>
    %c0_10 = arith.constant 0 : index
    %c0_11 = arith.constant 0 : index
    %19 = vector.load %arg3[%c0_10, %c0_11] : memref<128x128xf32, #tpu.memory_space<vmem>>, vector<128x128xf32>
    %cst_12 = arith.constant dense<0.000000e+00> : vector<128x128xf32>
    %20 = tpu.matmul %18, %19, %cst_12 {dimension_numbers = #tpu.dot_dimension_numbers<[1], [0], [0], [1], [0, 0, 1, 1], [], []>} : vector<128x128xf32>, vector<128x128xf32>, vector<128x128xf32> -> vector<128x128xf32>
    %21 = vector.broadcast %5 : vector<128x1xf32> to vector<128x128xf32>
    %22 = arith.mulf %21, %20 : vector<128x128xf32>
    %cst_13 = arith.constant dense<0.000000e+00> : vector<128x128xf32>
    %23 = tpu.matmul %0, %22, %cst_13 {dimension_numbers = #tpu.dot_dimension_numbers<[0], [0], [1], [1], [0, 1, 1, 1], [], []>} : vector<128x128xf32>, vector<128x128xf32>, vector<128x128xf32> -> vector<128x128xf32>
    %24 = vector.broadcast %5 : vector<128x1xf32> to vector<128x128xf32>
    %25 = arith.mulf %24, %23 : vector<128x128xf32>
    %26 = tpu.transpose %25, [1, 0] : vector<128x128xf32> -> vector<128x128xf32>
    %c0_14 = arith.constant 0 : index
    %c0_15 = arith.constant 0 : index
    %27 = vector.load %arg4[%c0_14, %c0_15] : memref<128x128xf32, #tpu.memory_space<vmem>>, vector<128x128xf32>
    tpu.vector_store %arg4[%c0_14, %c0_15], %26 {strides = array<i32>} : memref<128x128xf32, #tpu.memory_space<vmem>>, vector<128x128xf32>,
    return
  }
}

</mosaic_0001>

<llo_original>
// kernel: tpu_custom_call.1
$region0: #{tpu_custom_call.1}
  #allocation0 [shape = 'u32[]', space=smem, size = 0x4, offset = 0x4, fixed_abs, tag = 'smem constant byte address 0x4 - core index']
  #allocation1 [shape = 'u32[72,128]{1,0:T(1,128)}', space=vmem, size = 0x9000, scoped, tag = 'internal scratch']
  %s0 = inlined_call_operand.vmem [shape: f32[128,128], index: 0, kind: input, shape index: {}]
  %s1 = inlined_call_operand.vmem [shape: f32[128,32], index: 1, kind: input, shape index: {}]
  %s2 = inlined_call_operand.vmem [shape: f32[32,128], index: 2, kind: input, shape index: {}]
  %s3 = inlined_call_operand.hbm [shape: f32[128,128], index: 3, kind: input, shape index: {}]
  %s4 = inlined_call_operand.hbm [shape: f32[128,128], index: 4, kind: output, shape index: {}]
  %s5 = sld [smem:[#allocation0]]
  $region30: #{tpu_custom_call.1} parent=0
    _
  %s7 = ssub.s32 1, %s5
  %s8 = scalar_select 0, %s7, %s5
  $region1: #{tpu_custom_call.1} parent=0
    #allocation2 [shape = 'u8[65536]{0}', space=vmem, size = 0x10000, scoped, tag = 'input window, operand 3, single buffered']
    #allocation3 [shape = 's32[1]{0}', space=sflag, size = 0x4, scoped, tag = 'scoped memory for tpu_custom_call.1']
    #allocation4 [shape = 's32[1]{0}', space=sflag, size = 0x4, scoped, tag = 'scoped memory for tpu_custom_call.1']
    #allocation5 [shape = 'u8[65536]{0}', space=vmem, size = 0x10000, scoped, tag = 'output window, operand 0, single buffered']
    %9 = vsyncpa [#allocation3], 0
    %10 = vsyncpa [#allocation4], 0
    // Predicated region
    $region2: #{tpu_custom_call.1} parent=1 // pred_check
      _
    $region3: #{tpu_custom_call.1} parent=1 // pred_check_branch
      %12 = sbr.rel (0) target = $region5
    $region4: #{tpu_custom_call.1} parent=1 // pred_region
      _
    $region5: #{tpu_custom_call.1} parent=1 // pred_fallthru
      _
    // Predicated region
    $region6: #{tpu_custom_call.1} parent=1 // pred_check
      _
    $region7: #{tpu_custom_call.1} parent=1 // pred_check_branch
      %14 = sbr.rel (0) target = $region9
    $region8: #{tpu_custom_call.1} parent=1 // pred_region
      _
    $region9: #{tpu_custom_call.1} parent=1 // pred_fallthru
      _
    // Predicated region
    $region10: #{tpu_custom_call.1} parent=1 // pred_check
      _
    $region11: #{tpu_custom_call.1} parent=1 // pred_check_branch
      %16 = sbr.rel (0) target = $region13
    $region12: #{tpu_custom_call.1} parent=1 // pred_region
      _
    $region13: #{tpu_custom_call.1} parent=1 // pred_fallthru
      _
    // Predicated region
    $region14: #{tpu_custom_call.1} parent=1 // pred_check
      _
    $region15: #{tpu_custom_call.1} parent=1 // pred_check_branch
      %18 = sbr.rel (0) target = $region17
    $region16: #{tpu_custom_call.1} parent=1 // pred_region
      %20 = vsyncadd [#allocation3], 0
      %s21 = sshll.u32 %s3, 4
      %s22 = int_to_ptr.hbm [resolvable:$true] %s21
      %s23 = sshll.u32 [#allocation2], 4
      %s24 = int_to_ptr.vmem [resolvable:$true] %s23
      %29 = dma.hbm_to_vmem [thread:$0]  %s22, 2048, %s24, [#allocation3], 128, 128, 8
    $region17: #{tpu_custom_call.1} parent=1 // pred_fallthru
      _
    // Predicated region
    $region18: #{tpu_custom_call.1} parent=1 // pred_check
      _
    $region19: #{tpu_custom_call.1} parent=1 // pred_check_branch
      %31 = sbr.rel (0) target = $region21
    $region20: #{tpu_custom_call.1} parent=1 // pred_region
      %33 = dma.done [#allocation3], 2048
    $region21: #{tpu_custom_call.1} parent=1 // pred_fallthru
      _
    %v34 = vld [vmem:[%s0] sm:$0xff]
    %v35 = vld [vmem:[%s0 + $0x8] sm:$0xff]
    %v36 = vld [vmem:[%s0 + $0x10] sm:$0xff]
    %v37 = vld [vmem:[%s0 + $0x18] sm:$0xff]
    %v38 = vld [vmem:[%s0 + $0x20] sm:$0xff]
    %v39 = vld [vmem:[%s0 + $0x28] sm:$0xff]
    %v40 = vld [vmem:[%s0 + $0x30] sm:$0xff]
    %v41 = vld [vmem:[%s0 + $0x38] sm:$0xff]
    %v42 = vld [vmem:[%s0 + $0x40] sm:$0xff]
    %v43 = vld [vmem:[%s0 + $0x48] sm:$0xff]
    %v44 = vld [vmem:[%s0 + $0x50] sm:$0xff]
    %v45 = vld [vmem:[%s0 + $0x58] sm:$0xff]
    %v46 = vld [vmem:[%s0 + $0x60] sm:$0xff]
    %v47 = vld [vmem:[%s0 + $0x68] sm:$0xff]
    %v48 = vld [vmem:[%s0 + $0x70] sm:$0xff]
    %v49 = vld [vmem:[%s0 + $0x78] sm:$0xff]
    %50 = vadd.xlane.f32.xlu0 %v34
    %v51 = vpop.xlane.xlu0 %50
    %52 = vadd.xlane.f32.xlu0 %v35
    %v53 = vpop.xlane.xlu0 %52
    %54 = vadd.xlane.f32.xlu0 %v36
    %v55 = vpop.xlane.xlu0 %54
    %56 = vadd.xlane.f32.xlu0 %v37
    %v57 = vpop.xlane.xlu0 %56
    %58 = vadd.xlane.f32.xlu0 %v38
    %v59 = vpop.xlane.xlu0 %58
    %60 = vadd.xlane.f32.xlu0 %v39
    %v61 = vpop.xlane.xlu0 %60
    %62 = vadd.xlane.f32.xlu0 %v40
    %v63 = vpop.xlane.xlu0 %62
    %64 = vadd.xlane.f32.xlu0 %v41
    %v65 = vpop.xlane.xlu0 %64
    %66 = vadd.xlane.f32.xlu0 %v42
    %v67 = vpop.xlane.xlu0 %66
    %68 = vadd.xlane.f32.xlu0 %v43
    %v69 = vpop.xlane.xlu0 %68
    %70 = vadd.xlane.f32.xlu0 %v44
    %v71 = vpop.xlane.xlu0 %70
    %72 = vadd.xlane.f32.xlu0 %v45
    %v73 = vpop.xlane.xlu0 %72
    %74 = vadd.xlane.f32.xlu0 %v46
    %v75 = vpop.xlane.xlu0 %74
    %76 = vadd.xlane.f32.xlu0 %v47
    %v77 = vpop.xlane.xlu0 %76
    %78 = vadd.xlane.f32.xlu0 %v48
    %v79 = vpop.xlane.xlu0 %78
    %80 = vadd.xlane.f32.xlu0 %v49
    %v81 = vpop.xlane.xlu0 %80
    %v82 = vmax.f32 %v51, 1e-12
    %v83 = vmax.f32 %v53, 1e-12
    %v84 = vmax.f32 %v55, 1e-12
    %v85 = vmax.f32 %v57, 1e-12
    %v86 = vmax.f32 %v59, 1e-12
    %v87 = vmax.f32 %v61, 1e-12
    %v88 = vmax.f32 %v63, 1e-12
    %v89 = vmax.f32 %v65, 1e-12
    %v90 = vmax.f32 %v67, 1e-12
    %v91 = vmax.f32 %v69, 1e-12
    %v92 = vmax.f32 %v71, 1e-12
    %v93 = vmax.f32 %v73, 1e-12
    %v94 = vmax.f32 %v75, 1e-12
    %v95 = vmax.f32 %v77, 1e-12
    %v96 = vmax.f32 %v79, 1e-12
    %v97 = vmax.f32 %v81, 1e-12
    %v98 = vrsqrt.pop %v82
    %v99 = vmul.f32 %v98, %v82
    %v100 = vmul.f32 %v99, %v98
    %v101 = vmul.f32 0.5, %v100
    %v102 = vsub.f32 1.5, %v101
    %v103 = vmul.f32 %v98, %v102
    %vm104 = vweird.f32 %v82
    %vm105 = vweird.f32 %v98
    %vm106 = vmor %vm104, %vm105
    %v107 = vsel %vm106, %v98, %v103
    %v108 = vrsqrt.pop %v83
    %v109 = vmul.f32 %v108, %v83
    %v110 = vmul.f32 %v109, %v108
    %v111 = vmul.f32 0.5, %v110
    %v112 = vsub.f32 1.5, %v111
    %v113 = vmul.f32 %v108, %v112
    %vm114 = vweird.f32 %v83
    %vm115 = vweird.f32 %v108
    %vm116 = vmor %vm114, %vm115
    %v117 = vsel %vm116, %v108, %v113
    %v118 = vrsqrt.pop %v84
    %v119 = vmul.f32 %v118, %v84
    %v120 = vmul.f32 %v119, %v118
    %v121 = vmul.f32 0.5, %v120
    %v122 = vsub.f32 1.5, %v121
    %v123 = vmul.f32 %v118, %v122
    %vm124 = vweird.f32 %v84
    %vm125 = vweird.f32 %v118
    %vm126 = vmor %vm124, %vm125
    %v127 = vsel %vm126, %v118, %v123
    %v128 = vrsqrt.pop %v85
    %v129 = vmul.f32 %v128, %v85
    %v130 = vmul.f32 %v129, %v128
    %v131 = vmul.f32 0.5, %v130
    %v132 = vsub.f32 1.5, %v131
    %v133 = vmul.f32 %v128, %v132
    %vm134 = vweird.f32 %v85
    %vm135 = vweird.f32 %v128
    %vm136 = vmor %vm134, %vm135
    %v137 = vsel %vm136, %v128, %v133
    %v138 = vrsqrt.pop %v86
    %v139 = vmul.f32 %v138, %v86
    %v140 = vmul.f32 %v139, %v138
    %v141 = vmul.f32 0.5, %v140
    %v142 = vsub.f32 1.5, %v141
    %v143 = vmul.f32 %v138, %v142
    %vm144 = vweird.f32 %v86
    %vm145 = vweird.f32 %v138
    %vm146 = vmor %vm144, %vm145
    %v147 = vsel %vm146, %v138, %v143
    %v148 = vrsqrt.pop %v87
    %v149 = vmul.f32 %v148, %v87
    %v150 = vmul.f32 %v149, %v148
    %v151 = vmul.f32 0.5, %v150
    %v152 = vsub.f32 1.5, %v151
    %v153 = vmul.f32 %v148, %v152
    %vm154 = vweird.f32 %v87
    %vm155 = vweird.f32 %v148
    %vm156 = vmor %vm154, %vm155
    %v157 = vsel %vm156, %v148, %v153
    %v158 = vrsqrt.pop %v88
    %v159 = vmul.f32 %v158, %v88
    %v160 = vmul.f32 %v159, %v158
    %v161 = vmul.f32 0.5, %v160
    %v162 = vsub.f32 1.5, %v161
    %v163 = vmul.f32 %v158, %v162
    %vm164 = vweird.f32 %v88
    %vm165 = vweird.f32 %v158
    %vm166 = vmor %vm164, %vm165
    %v167 = vsel %vm166, %v158, %v163
    %v168 = vrsqrt.pop %v89
    %v169 = vmul.f32 %v168, %v89
    %v170 = vmul.f32 %v169, %v168
    %v171 = vmul.f32 0.5, %v170
    %v172 = vsub.f32 1.5, %v171
    %v173 = vmul.f32 %v168, %v172
    %vm174 = vweird.f32 %v89
    %vm175 = vweird.f32 %v168
    %vm176 = vmor %vm174, %vm175
    %v177 = vsel %vm176, %v168, %v173
    %v178 = vrsqrt.pop %v90
    %v179 = vmul.f32 %v178, %v90
    %v180 = vmul.f32 %v179, %v178
    %v181 = vmul.f32 0.5, %v180
    %v182 = vsub.f32 1.5, %v181
    %v183 = vmul.f32 %v178, %v182
    %vm184 = vweird.f32 %v90
    %vm185 = vweird.f32 %v178
    %vm186 = vmor %vm184, %vm185
    %v187 = vsel %vm186, %v178, %v183
    %v188 = vrsqrt.pop %v91
    %v189 = vmul.f32 %v188, %v91
    %v190 = vmul.f32 %v189, %v188
    %v191 = vmul.f32 0.5, %v190
    %v192 = vsub.f32 1.5, %v191
    %v193 = vmul.f32 %v188, %v192
    %vm194 = vweird.f32 %v91
    %vm195 = vweird.f32 %v188
    %vm196 = vmor %vm194, %vm195
    %v197 = vsel %vm196, %v188, %v193
    %v198 = vrsqrt.pop %v92
    %v199 = vmul.f32 %v198, %v92
    %v200 = vmul.f32 %v199, %v198
    %v201 = vmul.f32 0.5, %v200
    %v202 = vsub.f32 1.5, %v201
    %v203 = vmul.f32 %v198, %v202
    %vm204 = vweird.f32 %v92
    %vm205 = vweird.f32 %v198
    %vm206 = vmor %vm204, %vm205
    %v207 = vsel %vm206, %v198, %v203
    %v208 = vrsqrt.pop %v93
    %v209 = vmul.f32 %v208, %v93
    %v210 = vmul.f32 %v209, %v208
    %v211 = vmul.f32 0.5, %v210
    %v212 = vsub.f32 1.5, %v211
    %v213 = vmul.f32 %v208, %v212
    %vm214 = vweird.f32 %v93
    %vm215 = vweird.f32 %v208
    %vm216 = vmor %vm214, %vm215
    %v217 = vsel %vm216, %v208, %v213
    %v218 = vrsqrt.pop %v94
    %v219 = vmul.f32 %v218, %v94
    %v220 = vmul.f32 %v219, %v218
    %v221 = vmul.f32 0.5, %v220
    %v222 = vsub.f32 1.5, %v221
    %v223 = vmul.f32 %v218, %v222
    %vm224 = vweird.f32 %v94
    %vm225 = vweird.f32 %v218
    %vm226 = vmor %vm224, %vm225
    %v227 = vsel %vm226, %v218, %v223
    %v228 = vrsqrt.pop %v95
    %v229 = vmul.f32 %v228, %v95
    %v230 = vmul.f32 %v229, %v228
    %v231 = vmul.f32 0.5, %v230
    %v232 = vsub.f32 1.5, %v231
    %v233 = vmul.f32 %v228, %v232
    %vm234 = vweird.f32 %v95
    %vm235 = vweird.f32 %v228
    %vm236 = vmor %vm234, %vm235
    %v237 = vsel %vm236, %v228, %v233
    %v238 = vrsqrt.pop %v96
    %v239 = vmul.f32 %v238, %v96
    %v240 = vmul.f32 %v239, %v238
    %v241 = vmul.f32 0.5, %v240
    %v242 = vsub.f32 1.5, %v241
    %v243 = vmul.f32 %v238, %v242
    %vm244 = vweird.f32 %v96
    %vm245 = vweird.f32 %v238
    %vm246 = vmor %vm244, %vm245
    %v247 = vsel %vm246, %v238, %v243
    %v248 = vrsqrt.pop %v97
    %v249 = vmul.f32 %v248, %v97
    %v250 = vmul.f32 %v249, %v248
    %v251 = vmul.f32 0.5, %v250
    %v252 = vsub.f32 1.5, %v251
    %v253 = vmul.f32 %v248, %v252
    %vm254 = vweird.f32 %v97
    %vm255 = vweird.f32 %v248
    %vm256 = vmor %vm254, %vm255
    %v257 = vsel %vm256, %v248, %v253
    %v258 = vld [vmem:[%s1] sm:$0xff]
    %v259 = vld [vmem:[%s1 + $0x8] sm:$0xff]
    %v260 = vld [vmem:[%s1 + $0x10] sm:$0xff]
    %v261 = vld [vmem:[%s1 + $0x18] sm:$0xff]
    %v262 = vld [vmem:[%s1 + $0x20] sm:$0xff]
    %v263 = vld [vmem:[%s1 + $0x28] sm:$0xff]
    %v264 = vld [vmem:[%s1 + $0x30] sm:$0xff]
    %v265 = vld [vmem:[%s1 + $0x38] sm:$0xff]
    %v266 = vld [vmem:[%s1 + $0x40] sm:$0xff]
    %v267 = vld [vmem:[%s1 + $0x48] sm:$0xff]
    %v268 = vld [vmem:[%s1 + $0x50] sm:$0xff]
    %v269 = vld [vmem:[%s1 + $0x58] sm:$0xff]
    %v270 = vld [vmem:[%s1 + $0x60] sm:$0xff]
    %v271 = vld [vmem:[%s1 + $0x68] sm:$0xff]
    %v272 = vld [vmem:[%s1 + $0x70] sm:$0xff]
    %v273 = vld [vmem:[%s1 + $0x78] sm:$0xff]
    %v274 = vld [vmem:[%s2] sm:$0xff]
    %v275 = vld [vmem:[%s2 + $0x8] sm:$0xff]
    %v276 = vld [vmem:[%s2 + $0x10] sm:$0xff]
    %v277 = vld [vmem:[%s2 + $0x18] sm:$0xff]
    %vm278 = vcmask 261120
    %v280 = vsel %vm278, %v258, 0
    %v283 = vsel %vm278, %v259, 0
    %v286 = vsel %vm278, %v260, 0
    %v289 = vsel %vm278, %v261, 0
    %v292 = vsel %vm278, %v262, 0
    %v295 = vsel %vm278, %v263, 0
    %v298 = vsel %vm278, %v264, 0
    %v301 = vsel %vm278, %v265, 0
    %v304 = vsel %vm278, %v266, 0
    %v307 = vsel %vm278, %v267, 0
    %v310 = vsel %vm278, %v268, 0
    %v313 = vsel %vm278, %v269, 0
    %v316 = vsel %vm278, %v270, 0
    %v319 = vsel %vm278, %v271, 0
    %v322 = vsel %vm278, %v272, 0
    %v325 = vsel %vm278, %v273, 0
    %327 = vmatpush.msra.mxu0 0.0
    %328 = vmatpush.msra.mxu0 0.0
    %329 = vmatpush.msra.mxu0 0.0
    %330 = vmatpush.msra.mxu0 0.0
    %331 = vmatpush.msra.mxu0 0.0
    %332 = vmatpush.msra.mxu0 0.0
    %333 = vmatpush.msra.mxu0 0.0
    %334 = vmatpush.msra.mxu0 0.0
    %335 = vmatpush.msra.mxu0 0.0
    %336 = vmatpush.msra.mxu0 0.0
    %337 = vmatpush.msra.mxu0 0.0
    %338 = vmatpush.msra.mxu0 0.0
    %339 = vmatpush.msra.mxu0 %v277
    %340 = vmatpush.msra.mxu0 %v276
    %341 = vmatpush.msra.mxu0 %v275
    %342 = vmatpush.msra.mxu0 %v274
    %343 = vmatmul.f32.gmra.mxu0 %v280
    %v344 = vpop.f32.mrf.mxu0
    %v345 = vadd.f32 0.0, %v344
    %346 = vmatmul.f32.gmra.mxu0 %v283
    %v347 = vpop.f32.mrf.mxu0
    %v348 = vadd.f32 0.0, %v347
    %349 = vmatmul.f32.gmra.mxu0 %v286
    %v350 = vpop.f32.mrf.mxu0
    %v351 = vadd.f32 0.0, %v350
    %352 = vmatmul.f32.gmra.mxu0 %v289
    %v353 = vpop.f32.mrf.mxu0
    %v354 = vadd.f32 0.0, %v353
    %355 = vmatmul.f32.gmra.mxu0 %v292
    %v356 = vpop.f32.mrf.mxu0
    %v357 = vadd.f32 0.0, %v356
    %358 = vmatmul.f32.gmra.mxu0 %v295
    %v359 = vpop.f32.mrf.mxu0
    %v360 = vadd.f32 0.0, %v359
    %361 = vmatmul.f32.gmra.mxu0 %v298
    %v362 = vpop.f32.mrf.mxu0
    %v363 = vadd.f32 0.0, %v362
    %364 = vmatmul.f32.gmra.mxu0 %v301
    %v365 = vpop.f32.mrf.mxu0
    %v366 = vadd.f32 0.0, %v365
    %367 = vmatmul.f32.gmra.mxu0 %v304
    %v368 = vpop.f32.mrf.mxu0
    %v369 = vadd.f32 0.0, %v368
    %370 = vmatmul.f32.gmra.mxu0 %v307
    %v371 = vpop.f32.mrf.mxu0
    %v372 = vadd.f32 0.0, %v371
    %373 = vmatmul.f32.gmra.mxu0 %v310
    %v374 = vpop.f32.mrf.mxu0
    %v375 = vadd.f32 0.0, %v374
    %376 = vmatmul.f32.gmra.mxu0 %v313
    %v377 = vpop.f32.mrf.mxu0
    %v378 = vadd.f32 0.0, %v377
    %379 = vmatmul.f32.gmra.mxu0 %v316
    %v380 = vpop.f32.mrf.mxu0
    %v381 = vadd.f32 0.0, %v380
    %382 = vmatmul.f32.gmra.mxu0 %v319
    %v383 = vpop.f32.mrf.mxu0
    %v384 = vadd.f32 0.0, %v383
    %385 = vmatmul.f32.gmra.mxu0 %v322
    %v386 = vpop.f32.mrf.mxu0
    %v387 = vadd.f32 0.0, %v386
    %388 = vmatmul.f32.gmra.mxu0 %v325
    %v389 = vpop.f32.mrf.mxu0
    %v390 = vadd.f32 0.0, %v389
    %391 = vdwg.mxu0
    %v392 = vmul.f32 %v107, %v345
    %v393 = vmul.f32 %v117, %v348
    %v394 = vmul.f32 %v127, %v351
    %v395 = vmul.f32 %v137, %v354
    %v396 = vmul.f32 %v147, %v357
    %v397 = vmul.f32 %v157, %v360
    %v398 = vmul.f32 %v167, %v363
    %v399 = vmul.f32 %v177, %v366
    %v400 = vmul.f32 %v187, %v369
    %v401 = vmul.f32 %v197, %v372
    %v402 = vmul.f32 %v207, %v375
    %v403 = vmul.f32 %v217, %v378
    %v404 = vmul.f32 %v227, %v381
    %v405 = vmul.f32 %v237, %v384
    %v406 = vmul.f32 %v247, %v387
    %v407 = vmul.f32 %v257, %v390
    %408 = vxpose.xlu0.b32.start [1/16] %v34, 128
    %409 = vxpose.xlu0.b32.cont [2/16] %v35, 128
    %410 = vxpose.xlu0.b32.cont [3/16] %v36, 128
    %411 = vxpose.xlu0.b32.cont [4/16] %v37, 128
    %412 = vxpose.xlu0.b32.cont [5/16] %v38, 128
    %413 = vxpose.xlu0.b32.cont [6/16] %v39, 128
    %414 = vxpose.xlu0.b32.cont [7/16] %v40, 128
    %415 = vxpose.xlu0.b32.cont [8/16] %v41, 128
    %416 = vxpose.xlu0.b32.cont [9/16] %v42, 128
    %417 = vxpose.xlu0.b32.cont [10/16] %v43, 128
    %418 = vxpose.xlu0.b32.cont [11/16] %v44, 128
    %419 = vxpose.xlu0.b32.cont [12/16] %v45, 128
    %420 = vxpose.xlu0.b32.cont [13/16] %v46, 128
    %421 = vxpose.xlu0.b32.cont [14/16] %v47, 128
    %422 = vxpose.xlu0.b32.cont [15/16] %v48, 128
    %423 = vxpose.xlu0.b32.end [16/16] %v49, 128
    %v424 = vpop.trf.xlu0
    %v425 = vpop.trf.xlu0
    %v426 = vpop.trf.xlu0
    %v427 = vpop.trf.xlu0
    %v428 = vpop.trf.xlu0
    %v429 = vpop.trf.xlu0
    %v430 = vpop.trf.xlu0
    %v431 = vpop.trf.xlu0
    %v432 = vpop.trf.xlu0
    %v433 = vpop.trf.xlu0
    %v434 = vpop.trf.xlu0
    %v435 = vpop.trf.xlu0
    %v436 = vpop.trf.xlu0
    %v437 = vpop.trf.xlu0
    %v438 = vpop.trf.xlu0
    %v439 = vpop.trf.xlu0
    %440 = vmatpush.msra.mxu0 %v407
    %441 = vmatpush.msra.mxu0 %v406
    %442 = vmatpush.msra.mxu0 %v405
    %443 = vmatpush.msra.mxu0 %v404
    %444 = vmatpush.msra.mxu0 %v403
    %445 = vmatpush.msra.mxu0 %v402
    %446 = vmatpush.msra.mxu0 %v401
    %447 = vmatpush.msra.mxu0 %v400
    %448 = vmatpush.msra.mxu0 %v399
    %449 = vmatpush.msra.mxu0 %v398
    %450 = vmatpush.msra.mxu0 %v397
    %451 = vmatpush.msra.mxu0 %v396
    %452 = vmatpush.msra.mxu0 %v395
    %453 = vmatpush.msra.mxu0 %v394
    %454 = vmatpush.msra.mxu0 %v393
    %455 = vmatpush.msra.mxu0 %v392
    %456 = vmatmul.f32.gmra.mxu0 %v424
    %v457 = vpop.f32.mrf.mxu0
    %v458 = vadd.f32 0.0, %v457
    %459 = vmatmul.f32.gmra.mxu0 %v425
    %v460 = vpop.f32.mrf.mxu0
    %v461 = vadd.f32 0.0, %v460
    %462 = vmatmul.f32.gmra.mxu0 %v426
    %v463 = vpop.f32.mrf.mxu0
    %v464 = vadd.f32 0.0, %v463
    %465 = vmatmul.f32.gmra.mxu0 %v427
    %v466 = vpop.f32.mrf.mxu0
    %v467 = vadd.f32 0.0, %v466
    %468 = vmatmul.f32.gmra.mxu0 %v428
    %v469 = vpop.f32.mrf.mxu0
    %v470 = vadd.f32 0.0, %v469
    %471 = vmatmul.f32.gmra.mxu0 %v429
    %v472 = vpop.f32.mrf.mxu0
    %v473 = vadd.f32 0.0, %v472
    %474 = vmatmul.f32.gmra.mxu0 %v430
    %v475 = vpop.f32.mrf.mxu0
    %v476 = vadd.f32 0.0, %v475
    %477 = vmatmul.f32.gmra.mxu0 %v431
    %v478 = vpop.f32.mrf.mxu0
    %v479 = vadd.f32 0.0, %v478
    %480 = vmatmul.f32.gmra.mxu0 %v432
    %v481 = vpop.f32.mrf.mxu0
    %v482 = vadd.f32 0.0, %v481
    %483 = vmatmul.f32.gmra.mxu0 %v433
    %v484 = vpop.f32.mrf.mxu0
    %v485 = vadd.f32 0.0, %v484
    %486 = vmatmul.f32.gmra.mxu0 %v434
    %v487 = vpop.f32.mrf.mxu0
    %v488 = vadd.f32 0.0, %v487
    %489 = vmatmul.f32.gmra.mxu0 %v435
    %v490 = vpop.f32.mrf.mxu0
    %v491 = vadd.f32 0.0, %v490
    %492 = vmatmul.f32.gmra.mxu0 %v436
    %v493 = vpop.f32.mrf.mxu0
    %v494 = vadd.f32 0.0, %v493
    %495 = vmatmul.f32.gmra.mxu0 %v437
    %v496 = vpop.f32.mrf.mxu0
    %v497 = vadd.f32 0.0, %v496
    %498 = vmatmul.f32.gmra.mxu0 %v438
    %v499 = vpop.f32.mrf.mxu0
    %v500 = vadd.f32 0.0, %v499
    %501 = vmatmul.f32.gmra.mxu0 %v439
    %v502 = vpop.f32.mrf.mxu0
    %v503 = vadd.f32 0.0, %v502
    %504 = vdwg.mxu0
    %v505 = vmul.f32 %v107, %v458
    %v506 = vmul.f32 %v117, %v461
    %v507 = vmul.f32 %v127, %v464
    %v508 = vmul.f32 %v137, %v467
    %v509 = vmul.f32 %v147, %v470
    %v510 = vmul.f32 %v157, %v473
    %v511 = vmul.f32 %v167, %v476
    %v512 = vmul.f32 %v177, %v479
    %v513 = vmul.f32 %v187, %v482
    %v514 = vmul.f32 %v197, %v485
    %v515 = vmul.f32 %v207, %v488
    %v516 = vmul.f32 %v217, %v491
    %v517 = vmul.f32 %v227, %v494
    %v518 = vmul.f32 %v237, %v497
    %v519 = vmul.f32 %v247, %v500
    %v520 = vmul.f32 %v257, %v503
    %vm521 = vcmp.ge.f32.partialorder %v505, 0.0
    %vm522 = vcmp.ge.f32.partialorder %v506, 0.0
    %vm523 = vcmp.ge.f32.partialorder %v507, 0.0
    %vm524 = vcmp.ge.f32.partialorder %v508, 0.0
    %vm525 = vcmp.ge.f32.partialorder %v509, 0.0
    %vm526 = vcmp.ge.f32.partialorder %v510, 0.0
    %vm527 = vcmp.ge.f32.partialorder %v511, 0.0
    %vm528 = vcmp.ge.f32.partialorder %v512, 0.0
    %vm529 = vcmp.ge.f32.partialorder %v513, 0.0
    %vm530 = vcmp.ge.f32.partialorder %v514, 0.0
    %vm531 = vcmp.ge.f32.partialorder %v515, 0.0
    %vm532 = vcmp.ge.f32.partialorder %v516, 0.0
    %vm533 = vcmp.ge.f32.partialorder %v517, 0.0
    %vm534 = vcmp.ge.f32.partialorder %v518, 0.0
    %vm535 = vcmp.ge.f32.partialorder %v519, 0.0
    %vm536 = vcmp.ge.f32.partialorder %v520, 0.0
    %v537 = vmul.f32 %v505, 0.2
    %v538 = vmul.f32 %v506, 0.2
    %v539 = vmul.f32 %v507, 0.2
    %v540 = vmul.f32 %v508, 0.2
    %v541 = vmul.f32 %v509, 0.2
    %v542 = vmul.f32 %v510, 0.2
    %v543 = vmul.f32 %v511, 0.2
    %v544 = vmul.f32 %v512, 0.2
    %v545 = vmul.f32 %v513, 0.2
    %v546 = vmul.f32 %v514, 0.2
    %v547 = vmul.f32 %v515, 0.2
    %v548 = vmul.f32 %v516, 0.2
    %v549 = vmul.f32 %v517, 0.2
    %v550 = vmul.f32 %v518, 0.2
    %v551 = vmul.f32 %v519, 0.2
    %v552 = vmul.f32 %v520, 0.2
    %v553 = vsel %vm521, %v505, %v537
    %v554 = vsel %vm522, %v506, %v538
    %v555 = vsel %vm523, %v507, %v539
    %v556 = vsel %vm524, %v508, %v540
    %v557 = vsel %vm525, %v509, %v541
    %v558 = vsel %vm526, %v510, %v542
    %v559 = vsel %vm527, %v511, %v543
    %v560 = vsel %vm528, %v512, %v544
    %v561 = vsel %vm529, %v513, %v545
    %v562 = vsel %vm530, %v514, %v546
    %v563 = vsel %vm531, %v515, %v547
    %v564 = vsel %vm532, %v516, %v548
    %v565 = vsel %vm533, %v517, %v549
    %v566 = vsel %vm534, %v518, %v550
    %v567 = vsel %vm535, %v519, %v551
    %v568 = vsel %vm536, %v520, %v552
    %v569 = vld [vmem:[#allocation2] sm:$0xff]
    %v570 = vld [vmem:[#allocation2 + $0x8] sm:$0xff]
    %v571 = vld [vmem:[#allocation2 + $0x10] sm:$0xff]
    %v572 = vld [vmem:[#allocation2 + $0x18] sm:$0xff]
    %v573 = vld [vmem:[#allocation2 + $0x20] sm:$0xff]
    %v574 = vld [vmem:[#allocation2 + $0x28] sm:$0xff]
    %v575 = vld [vmem:[#allocation2 + $0x30] sm:$0xff]
    %v576 = vld [vmem:[#allocation2 + $0x38] sm:$0xff]
    %v577 = vld [vmem:[#allocation2 + $0x40] sm:$0xff]
    %v578 = vld [vmem:[#allocation2 + $0x48] sm:$0xff]
    %v579 = vld [vmem:[#allocation2 + $0x50] sm:$0xff]
    %v580 = vld [vmem:[#allocation2 + $0x58] sm:$0xff]
    %v581 = vld [vmem:[#allocation2 + $0x60] sm:$0xff]
    %v582 = vld [vmem:[#allocation2 + $0x68] sm:$0xff]
    %v583 = vld [vmem:[#allocation2 + $0x70] sm:$0xff]
    %v584 = vld [vmem:[#allocation2 + $0x78] sm:$0xff]
    %585 = vmatpush.msra.mxu0 %v584
    %586 = vmatpush.msra.mxu0 %v583
    %587 = vmatpush.msra.mxu0 %v582
    %588 = vmatpush.msra.mxu0 %v581
    %589 = vmatpush.msra.mxu0 %v580
    %590 = vmatpush.msra.mxu0 %v579
    %591 = vmatpush.msra.mxu0 %v578
    %592 = vmatpush.msra.mxu0 %v577
    %593 = vmatpush.msra.mxu0 %v576
    %594 = vmatpush.msra.mxu0 %v575
    %595 = vmatpush.msra.mxu0 %v574
    %596 = vmatpush.msra.mxu0 %v573
    %597 = vmatpush.msra.mxu0 %v572
    %598 = vmatpush.msra.mxu0 %v571
    %599 = vmatpush.msra.mxu0 %v570
    %600 = vmatpush.msra.mxu0 %v569
    %601 = vmatmul.f32.gmra.mxu0 %v553
    %v602 = vpop.f32.mrf.mxu0
    %v603 = vadd.f32 0.0, %v602
    %604 = vmatmul.f32.gmra.mxu0 %v554
    %v605 = vpop.f32.mrf.mxu0
    %v606 = vadd.f32 0.0, %v605
    %607 = vmatmul.f32.gmra.mxu0 %v555
    %v608 = vpop.f32.mrf.mxu0
    %v609 = vadd.f32 0.0, %v608
    %610 = vmatmul.f32.gmra.mxu0 %v556
    %v611 = vpop.f32.mrf.mxu0
    %v612 = vadd.f32 0.0, %v611
    %613 = vmatmul.f32.gmra.mxu0 %v557
    %v614 = vpop.f32.mrf.mxu0
    %v615 = vadd.f32 0.0, %v614
    %616 = vmatmul.f32.gmra.mxu0 %v558
    %v617 = vpop.f32.mrf.mxu0
    %v618 = vadd.f32 0.0, %v617
    %619 = vmatmul.f32.gmra.mxu0 %v559
    %v620 = vpop.f32.mrf.mxu0
    %v621 = vadd.f32 0.0, %v620
    %622 = vmatmul.f32.gmra.mxu0 %v560
    %v623 = vpop.f32.mrf.mxu0
    %v624 = vadd.f32 0.0, %v623
    %625 = vmatmul.f32.gmra.mxu0 %v561
    %v626 = vpop.f32.mrf.mxu0
    %v627 = vadd.f32 0.0, %v626
    %628 = vmatmul.f32.gmra.mxu0 %v562
    %v629 = vpop.f32.mrf.mxu0
    %v630 = vadd.f32 0.0, %v629
    %631 = vmatmul.f32.gmra.mxu0 %v563
    %v632 = vpop.f32.mrf.mxu0
    %v633 = vadd.f32 0.0, %v632
    %634 = vmatmul.f32.gmra.mxu0 %v564
    %v635 = vpop.f32.mrf.mxu0
    %v636 = vadd.f32 0.0, %v635
    %637 = vmatmul.f32.gmra.mxu0 %v565
    %v638 = vpop.f32.mrf.mxu0
    %v639 = vadd.f32 0.0, %v638
    %640 = vmatmul.f32.gmra.mxu0 %v566
    %v641 = vpop.f32.mrf.mxu0
    %v642 = vadd.f32 0.0, %v641
    %643 = vmatmul.f32.gmra.mxu0 %v567
    %v644 = vpop.f32.mrf.mxu0
    %v645 = vadd.f32 0.0, %v644
    %646 = vmatmul.f32.gmra.mxu0 %v568
    %v647 = vpop.f32.mrf.mxu0
    %v648 = vadd.f32 0.0, %v647
    %649 = vdwg.mxu0
    %v650 = vmul.f32 %v107, %v603
    %v651 = vmul.f32 %v117, %v606
    %v652 = vmul.f32 %v127, %v609
    %v653 = vmul.f32 %v137, %v612
    %v654 = vmul.f32 %v147, %v615
    %v655 = vmul.f32 %v157, %v618
    %v656 = vmul.f32 %v167, %v621
    %v657 = vmul.f32 %v177, %v624
    %v658 = vmul.f32 %v187, %v627
    %v659 = vmul.f32 %v197, %v630
    %v660 = vmul.f32 %v207, %v633
    %v661 = vmul.f32 %v217, %v636
    %v662 = vmul.f32 %v227, %v639
    %v663 = vmul.f32 %v237, %v642
    %v664 = vmul.f32 %v247, %v645
    %v665 = vmul.f32 %v257, %v648
    %666 = vmatpush.msra.mxu0 %v665
    %667 = vmatpush.msra.mxu0 %v664
    %668 = vmatpush.msra.mxu0 %v663
    %669 = vmatpush.msra.mxu0 %v662
    %670 = vmatpush.msra.mxu0 %v661
    %671 = vmatpush.msra.mxu0 %v660
    %672 = vmatpush.msra.mxu0 %v659
    %673 = vmatpush.msra.mxu0 %v658
    %674 = vmatpush.msra.mxu0 %v657
    %675 = vmatpush.msra.mxu0 %v656
    %676 = vmatpush.msra.mxu0 %v655
    %677 = vmatpush.msra.mxu0 %v654
    %678 = vmatpush.msra.mxu0 %v653
    %679 = vmatpush.msra.mxu0 %v652
    %680 = vmatpush.msra.mxu0 %v651
    %681 = vmatpush.msra.mxu0 %v650
    %682 = vmatmul.f32.gmra.mxu0 %v424
    %v683 = vpop.f32.mrf.mxu0
    %v684 = vadd.f32 0.0, %v683
    %685 = vmatmul.f32.gmra.mxu0 %v425
    %v686 = vpop.f32.mrf.mxu0
    %v687 = vadd.f32 0.0, %v686
    %688 = vmatmul.f32.gmra.mxu0 %v426
    %v689 = vpop.f32.mrf.mxu0
    %v690 = vadd.f32 0.0, %v689
    %691 = vmatmul.f32.gmra.mxu0 %v427
    %v692 = vpop.f32.mrf.mxu0
    %v693 = vadd.f32 0.0, %v692
    %694 = vmatmul.f32.gmra.mxu0 %v428
    %v695 = vpop.f32.mrf.mxu0
    %v696 = vadd.f32 0.0, %v695
    %697 = vmatmul.f32.gmra.mxu0 %v429
    %v698 = vpop.f32.mrf.mxu0
    %v699 = vadd.f32 0.0, %v698
    %700 = vmatmul.f32.gmra.mxu0 %v430
    %v701 = vpop.f32.mrf.mxu0
    %v702 = vadd.f32 0.0, %v701
    %703 = vmatmul.f32.gmra.mxu0 %v431
    %v704 = vpop.f32.mrf.mxu0
    %v705 = vadd.f32 0.0, %v704
    %706 = vmatmul.f32.gmra.mxu0 %v432
    %v707 = vpop.f32.mrf.mxu0
    %v708 = vadd.f32 0.0, %v707
    %709 = vmatmul.f32.gmra.mxu0 %v433
    %v710 = vpop.f32.mrf.mxu0
    %v711 = vadd.f32 0.0, %v710
    %712 = vmatmul.f32.gmra.mxu0 %v434
    %v713 = vpop.f32.mrf.mxu0
    %v714 = vadd.f32 0.0, %v713
    %715 = vmatmul.f32.gmra.mxu0 %v435
    %v716 = vpop.f32.mrf.mxu0
    %v717 = vadd.f32 0.0, %v716
    %718 = vmatmul.f32.gmra.mxu0 %v436
    %v719 = vpop.f32.mrf.mxu0
    %v720 = vadd.f32 0.0, %v719
    %721 = vmatmul.f32.gmra.mxu0 %v437
    %v722 = vpop.f32.mrf.mxu0
    %v723 = vadd.f32 0.0, %v722
    %724 = vmatmul.f32.gmra.mxu0 %v438
    %v725 = vpop.f32.mrf.mxu0
    %v726 = vadd.f32 0.0, %v725
    %727 = vmatmul.f32.gmra.mxu0 %v439
    %v728 = vpop.f32.mrf.mxu0
    %v729 = vadd.f32 0.0, %v728
    %730 = vdwg.mxu0
    %v731 = vmul.f32 %v107, %v684
    %v732 = vmul.f32 %v117, %v687
    %v733 = vmul.f32 %v127, %v690
    %v734 = vmul.f32 %v137, %v693
    %v735 = vmul.f32 %v147, %v696
    %v736 = vmul.f32 %v157, %v699
    %v737 = vmul.f32 %v167, %v702
    %v738 = vmul.f32 %v177, %v705
    %v739 = vmul.f32 %v187, %v708
    %v740 = vmul.f32 %v197, %v711
    %v741 = vmul.f32 %v207, %v714
    %v742 = vmul.f32 %v217, %v717
    %v743 = vmul.f32 %v227, %v720
    %v744 = vmul.f32 %v237, %v723
    %v745 = vmul.f32 %v247, %v726
    %v746 = vmul.f32 %v257, %v729
    %747 = vxpose.xlu0.b32.start [1/16] %v731, 128
    %748 = vxpose.xlu0.b32.cont [2/16] %v732, 128
    %749 = vxpose.xlu0.b32.cont [3/16] %v733, 128
    %750 = vxpose.xlu0.b32.cont [4/16] %v734, 128
    %751 = vxpose.xlu0.b32.cont [5/16] %v735, 128
    %752 = vxpose.xlu0.b32.cont [6/16] %v736, 128
    %753 = vxpose.xlu0.b32.cont [7/16] %v737, 128
    %754 = vxpose.xlu0.b32.cont [8/16] %v738, 128
    %755 = vxpose.xlu0.b32.cont [9/16] %v739, 128
    %756 = vxpose.xlu0.b32.cont [10/16] %v740, 128
    %757 = vxpose.xlu0.b32.cont [11/16] %v741, 128
    %758 = vxpose.xlu0.b32.cont [12/16] %v742, 128
    %759 = vxpose.xlu0.b32.cont [13/16] %v743, 128
    %760 = vxpose.xlu0.b32.cont [14/16] %v744, 128
    %761 = vxpose.xlu0.b32.cont [15/16] %v745, 128
    %762 = vxpose.xlu0.b32.end [16/16] %v746, 128
    %v763 = vpop.trf.xlu0
    %v764 = vpop.trf.xlu0
    %v765 = vpop.trf.xlu0
    %v766 = vpop.trf.xlu0
    %v767 = vpop.trf.xlu0
    %v768 = vpop.trf.xlu0
    %v769 = vpop.trf.xlu0
    %v770 = vpop.trf.xlu0
    %v771 = vpop.trf.xlu0
    %v772 = vpop.trf.xlu0
    %v773 = vpop.trf.xlu0
    %v774 = vpop.trf.xlu0
    %v775 = vpop.trf.xlu0
    %v776 = vpop.trf.xlu0
    %v777 = vpop.trf.xlu0
    %v778 = vpop.trf.xlu0
    %779 = vst [vmem:[#allocation5] sm:$0xff] %v763
    %780 = vst [vmem:[#allocation5 + $0x8] sm:$0xff] %v764
    %781 = vst [vmem:[#allocation5 + $0x10] sm:$0xff] %v765
    %782 = vst [vmem:[#allocation5 + $0x18] sm:$0xff] %v766
    %783 = vst [vmem:[#allocation5 + $0x20] sm:$0xff] %v767
    %784 = vst [vmem:[#allocation5 + $0x28] sm:$0xff] %v768
    %785 = vst [vmem:[#allocation5 + $0x30] sm:$0xff] %v769
    %786 = vst [vmem:[#allocation5 + $0x38] sm:$0xff] %v770
    %787 = vst [vmem:[#allocation5 + $0x40] sm:$0xff] %v771
    %788 = vst [vmem:[#allocation5 + $0x48] sm:$0xff] %v772
    %789 = vst [vmem:[#allocation5 + $0x50] sm:$0xff] %v773
    %790 = vst [vmem:[#allocation5 + $0x58] sm:$0xff] %v774
    %791 = vst [vmem:[#allocation5 + $0x60] sm:$0xff] %v775
    %792 = vst [vmem:[#allocation5 + $0x68] sm:$0xff] %v776
    %793 = vst [vmem:[#allocation5 + $0x70] sm:$0xff] %v777
    %794 = vst [vmem:[#allocation5 + $0x78] sm:$0xff] %v778
    // Predicated region
    $region22: #{tpu_custom_call.1} parent=1 // pred_check
      _
    $region23: #{tpu_custom_call.1} parent=1 // pred_check_branch
      %796 = sbr.rel (0) target = $region25
    $region24: #{tpu_custom_call.1} parent=1 // pred_region
      %798 = vsyncadd [#allocation4], 0
      %s799 = sshll.u32 [#allocation5], 4
      %s800 = int_to_ptr.vmem [resolvable:$true] %s799
      %s801 = sshll.u32 %s4, 4
      %s802 = int_to_ptr.hbm [resolvable:$true] %s801
      %807 = dma.vmem_to_hbm [thread:$0]  %s800, 2048, %s802, [#allocation4], 128, 128, 8
    $region25: #{tpu_custom_call.1} parent=1 // pred_fallthru
      _
    // Predicated region
    $region26: #{tpu_custom_call.1} parent=1 // pred_check
      _
    $region27: #{tpu_custom_call.1} parent=1 // pred_check_branch
      %809 = sbr.rel (0) target = $region29
    $region28: #{tpu_custom_call.1} parent=1 // pred_region
      %811 = dma.done [#allocation4], 2048
    $region29: #{tpu_custom_call.1} parent=1 // pred_fallthru
      _
    %812 = vsyncpa [#allocation3], 1
    %813 = vsyncpa [#allocation4], 1

</llo_original>
